<compile_context>
chip_gen: v6e
topology: v6e:2x2x1
jax: 0.10.0
libtpu: 0.0.40
codegen_flags: <defaults>
</compile_context>

<pallas_src>
import jax
import jax.numpy as jnp
from jax.experimental import pallas as pl
from jax.experimental.pallas import tpu as pltpu


# VMEM budget for the double-buffered (output + codes) blocks.  Leaves headroom
# under the 32 MiB scoped limit requested below (safe on v5e/v6e/v7x physical
# VMEM; the raise is *required* on v5e whose scoped default is 16 MiB).
_VMEM_BUDGET_BYTES = 24 * 1024 * 1024
_VMEM_LIMIT_BYTES = 32 * 1024 * 1024
# Below this many output bytes a pallas_call launch costs more than the write;
# XLA's one_hot is strictly faster there.
_SMALL_OUTPUT_BYTES = 1 * 1024 * 1024


def _one_hot_kernel(codes_ref, out_ref):
    # codes_ref: (TILE_B, 1) int32 in VMEM
    # out_ref:   (TILE_B, C) in VMEM
    _, C = out_ref.shape
    codes = codes_ref[...]                                   # (TILE_B, 1) int32
    # Lane-only iota; (TILE_B, 1) codes broadcast in the compare, so we never
    # materialize a (TILE_B, C) int32 iota (saves vregs / VALU filler).
    col = jax.lax.broadcasted_iota(jnp.int32, (1, C), 1)     # (1, C)
    out_ref[...] = (col == codes).astype(out_ref.dtype)      # (TILE_B, C)


def _sublane_multiple(dtype) -> int:
    # Native sublane packing: f32 -> 8 rows/vreg, bf16 -> 16, int8/fp8 -> 32.
    bits = jnp.dtype(dtype).itemsize * 8
    return max(8, 256 // max(bits, 1))


def _choose_tile_b(B: int, C: int, out_elem_bytes: int, sublane: int) -> int:
    # Per batch row held in VMEM: double-buffered output row (C * bytes) plus
    # the double-buffered codes row — a (tile_b, 1) int32 block lane-pads to
    # 128 lanes in VMEM, i.e. 512 B per row per buffer.
    per_row = 2 * C * out_elem_bytes + 2 * 128 * 4
    tile = (_VMEM_BUDGET_BYTES // per_row) // sublane * sublane
    tile = max(sublane, tile)
    b_ceil = ((B + sublane - 1) // sublane) * sublane
    return min(tile, b_ceil)


def one_hot_pallas(codes: jax.Array, num_conditions: int, dtype=jnp.float32,
                   *, force_pallas: bool = False, max_tile_b: int | None = None
                   ) -> jax.Array:
    """codes: int array of shape (B,) -> one-hot of shape (B, num_conditions)."""
    codes = jnp.asarray(codes, dtype=jnp.int32).reshape(-1)
    B = int(codes.shape[0])
    C = int(num_conditions)
    out_elem_bytes = jnp.dtype(dtype).itemsize

    if not force_pallas:
        # Lane-sparse class axis (masked partial stores) or tiny total output:
        # launch overhead dominates -> XLA's one_hot is strictly better.
        if C < 128 or B * C * out_elem_bytes < _SMALL_OUTPUT_BYTES:
            return jax.nn.one_hot(codes, C, dtype=dtype)

    sublane = _sublane_multiple(dtype)
    tile_b = _choose_tile_b(B, C, out_elem_bytes, sublane)
    if max_tile_b is not None:
        tile_b = min(tile_b, max(sublane, (max_tile_b // sublane) * sublane))
    grid = (pl.cdiv(B, tile_b),)

    # Exact (B, C) output: Pallas masks the out-of-range rows of the final
    # partial block on writeback, so no padded output / post-kernel slice.
    # NOTE: when B % tile_b != 0 the overhanging rows of the *input* codes
    # block contain unspecified data; that is safe only because the matching
    # output rows are OOB and masked on write.  Do not read / depend on them.
    return pl.pallas_call(
        _one_hot_kernel,
        out_shape=jax.ShapeDtypeStruct((B, C), dtype),
        grid_spec=pltpu.PrefetchScalarGridSpec(
            num_scalar_prefetch=0,
            grid=grid,
            in_specs=[pl.BlockSpec((tile_b, 1), lambda i: (i, 0))],
            out_specs=pl.BlockSpec((tile_b, C), lambda i: (i, 0)),
        ),
        compiler_params=pltpu.CompilerParams(
            # Independent batch tiles -> shard across v7x's 2 TensorCores;
            # neutral on v5e/v6e (1 TC).
            # TODO(synk): profile on v7x; if plain "parallel" does not engage
            # both TCs, switch this axis to pltpu.CORE_PARALLEL.
            dimension_semantics=("parallel",),
            # Required on v5e to keep double-buffering with ~8 MiB output
            # tiles; safe on all generations (>= 64 MiB physical VMEM).
            vmem_limit_bytes=_VMEM_LIMIT_BYTES,
        ),
        cost_estimate=pl.CostEstimate(
            flops=0,
            transcendentals=0,
            bytes_accessed=B * C * out_elem_bytes + B * 4,
        ),
    )(codes.reshape(B, 1))


class Condition2Tensor:
    """JAX/Pallas port of the PyTorch Condition2Tensor module."""

    def __init__(self, num_conditions: int, celltype_codes: dict, dtype=jnp.float32):
        self.num_conditions = num_conditions
        self.celltype_codes = celltype_codes
        # torch spec returns .float() -> keep float32 default for semantic
        # parity.  bfloat16 is lossless for {0,1} and halves the HBM write
        # traffic; pass dtype=jnp.bfloat16 when the consumer accepts it.
        self.dtype = dtype

    def __call__(self, condition):
        # Passthrough branch: already a float tensor -> return as-is (glue).
        if isinstance(condition, jax.Array) and jnp.issubdtype(
            condition.dtype, jnp.floating
        ):
            return condition
        # Lookup branch: condition is a key (or list of keys) into celltype_codes.
        if isinstance(condition, (list, tuple)):
            codes = [self.celltype_codes[c] for c in condition]
        else:
            codes = [self.celltype_codes[condition]]
        # TODO(synk): out-of-range codes produce an all-zero row instead of
        # raising like torch.nn.functional.one_hot.
        codes = jnp.asarray(codes, dtype=jnp.int32)
        out = one_hot_pallas(codes, self.num_conditions, dtype=self.dtype)
        if not isinstance(condition, (list, tuple)):
            out = out[0]  # match torch: single condition -> 1-D one-hot vector
        return out


if __name__ == "__main__":
    num_conditions = 256
    celltype_names = [f"celltype_{i}" for i in range(num_conditions)]
    celltype_codes = {name: i for i, name in enumerate(celltype_names)}
    module = Condition2Tensor(num_conditions, celltype_codes)

    key = jax.random.PRNGKey(0)

    # ---- Module path with a handful of conditions (small-batch fallback). ----
    batch = 10
    k0, k1, k2 = jax.random.split(key, 3)
    idx = jax.random.randint(k0, (batch,), 0, num_conditions)
    idx_host = [int(i) for i in jax.device_get(idx)]
    conditions = [celltype_names[i] for i in idx_host]

    out = jax.block_until_ready(module(conditions))
    ref = jax.nn.one_hot(jnp.asarray(idx_host, dtype=jnp.int32),
                         num_conditions, dtype=jnp.float32)
    assert out.shape == (batch, num_conditions), out.shape
    assert out.dtype == jnp.float32
    assert bool(jnp.all(out == ref))

    # Single-condition call -> 1-D one-hot vector (matches torch semantics).
    single = jax.block_until_ready(module(celltype_names[idx_host[0]]))
    assert single.shape == (num_conditions,)
    assert bool(jnp.all(single == ref[0]))

    # ---- Pallas path, f32: ragged batch, multiple grid blocks, masked tail. ----
    Bp = 1037  # not a multiple of 8 nor of the tile -> partial final block
    codes_p = jax.random.randint(k1, (Bp,), 0, num_conditions)
    out_p = jax.block_until_ready(
        one_hot_pallas(codes_p, num_conditions, dtype=jnp.float32,
                       force_pallas=True, max_tile_b=256))
    ref_p = jax.nn.one_hot(codes_p, num_conditions, dtype=jnp.float32)
    assert out_p.shape == (Bp, num_conditions)
    assert bool(jnp.all(out_p == ref_p))

    # ---- Pallas path, bf16 (lossless for {0,1}; halves HBM write traffic). ----
    Bb = 515
    codes_b = jax.random.randint(k2, (Bb,), 0, num_conditions)
    out_b = jax.block_until_ready(
        one_hot_pallas(codes_b, num_conditions, dtype=jnp.bfloat16,
                       force_pallas=True, max_tile_b=128))
    ref_b = jax.nn.one_hot(codes_b, num_conditions, dtype=jnp.bfloat16)
    assert out_b.dtype == jnp.bfloat16
    assert bool(jnp.all(out_b.astype(jnp.float32) == ref_b.astype(jnp.float32)))

    # ---- Small-C fallback path (C < 128 -> jax.nn.one_hot, no Pallas). ----
    small_module = Condition2Tensor(8, {f"ct{i}": i for i in range(8)})
    small_out = jax.block_until_ready(small_module(["ct3", "ct0", "ct7"]))
    assert bool(jnp.all(small_out == jax.nn.one_hot(
        jnp.array([3, 0, 7], dtype=jnp.int32), 8, dtype=jnp.float32)))

    # ---- Float passthrough branch. ----
    x_float = jax.random.normal(jax.random.PRNGKey(1), (batch, num_conditions),
                                dtype=jnp.float32)
    y = module(x_float)
    assert y is x_float

    print("KERNEL_OK")
</pallas_src>

<mosaic_0001>
module attributes {stable_mosaic.version = 11 : i64} {
  func.func @_one_hot_kernel(%arg0: i32, %arg1: memref<256x1xi32, #tpu.memory_space<vmem>>, %arg2: memref<256x256xf32, #tpu.memory_space<vmem>>) attributes {dimension_semantics = [#tpu.dimension_semantics<parallel>], iteration_bounds = array<i64: 5>, scalar_prefetch = 0 : i64, scratch_operands = 0 : i64, tpu.core_type = #tpu.core_type<tc>, window_params = [{transform_indices = @transform_0, window_bounds = array<i64: 256, 1>}, {transform_indices = @transform_1, window_bounds = array<i64: 256, 256>}]} {
    %c0 = arith.constant 0 : index
    %c0_0 = arith.constant 0 : index
    %0 = vector.load %arg1[%c0, %c0_0] : memref<256x1xi32, #tpu.memory_space<vmem>>, vector<256x1xi32>
    %1 = tpu.iota {dimensions = array<i32: 1>} : vector<1x256xi32>
    %2 = vector.broadcast %1 : vector<1x256xi32> to vector<256x256xi32>
    %3 = vector.broadcast %0 : vector<256x1xi32> to vector<256x256xi32>
    %4 = arith.cmpi eq, %2, %3 : vector<256x256xi32>
    %5 = arith.extui %4 : vector<256x256xi1> to vector<256x256xi32>
    %6 = arith.sitofp %5 : vector<256x256xi32> to vector<256x256xf32>
    %c0_1 = arith.constant 0 : index
    %c0_2 = arith.constant 0 : index
    %7 = vector.load %arg2[%c0_1, %c0_2] : memref<256x256xf32, #tpu.memory_space<vmem>>, vector<256x256xf32>
    tpu.vector_store %arg2[%c0_1, %c0_2], %6 {strides = array<i32>} : memref<256x256xf32, #tpu.memory_space<vmem>>, vector<256x256xf32>,
    return
  }
  func.func @transform_0(%arg0: i32) -> (i32, i32) {
    %c0_i32 = arith.constant 0 : i32
    %c0_i32_0 = arith.constant 0 : i32
    return %arg0, %c0_i32 : i32, i32
  }
  func.func @transform_1(%arg0: i32) -> (i32, i32) {
    %c0_i32 = arith.constant 0 : i32
    %c0_i32_0 = arith.constant 0 : i32
    return %arg0, %c0_i32 : i32, i32
  }
}

</mosaic_0001>

<llo_original>
// kernel: tpu_custom_call.1
$region0: #{tpu_custom_call.1}
  #allocation0 [shape = 'u32[]', space=smem, size = 0x4, offset = 0x4, fixed_abs, tag = 'smem constant byte address 0x4 - core index']
  #allocation1 [shape = 'u32[144,128]{1,0:T(1,128)}', space=vmem, size = 0x12000, scoped, tag = 'internal scratch']
  %s0 = inlined_call_operand.vmem [shape: s32[1037,1], index: 0, kind: input, shape index: {}]
  %s1 = inlined_call_operand.hbm [shape: f32[1037,256], index: 1, kind: output, shape index: {}]
  %s2 = sld [smem:[#allocation0]]
  $region37: #{tpu_custom_call.1} parent=0
    _
  %s4 = ssub.s32 1, %s2
  %s5 = scalar_select 0, %s4, %s2
  $region1: #{tpu_custom_call.1} parent=0
    #allocation2 [shape = 'u8[524288]{0}', space=vmem, size = 0x80000, scoped, tag = 'output window, operand 0']
    #allocation3 [shape = 's32[2]{0}', space=sflag, size = 0x8, scoped, tag = 'scoped memory for tpu_custom_call.1']
    %6 = vsyncpa [#allocation3], 0
    %s7 = scalar_lea.sflag [#allocation3], 1
    %8 = vsyncpa %s7, 0
    loop: start=0, step=1, limit=7
    $region2: #{tpu_custom_call.1} parent=1 // loop_pre_header
      _
    $region3: #{tpu_custom_call.1} parent=1 // loop_header
      %s10 = sphi 0, %s14
      %p11 = scmp.ge.s32.totalorder %s10, 7
      %s20 = sphi 0, %s22
      %s23 = sphi 0, %s20
      %s24 = sphi 0, %s23
      %s40 = sphi 0, %s24
      %s46 = sphi 0, %s48
      %s49 = sphi 0, %s46
      %s50 = sphi 0, %s49
      %s66 = sphi 0, %s50
    $region4: #{tpu_custom_call.1} parent=1 // loop_header_branch
      %13 = sbr.rel (%p11) target = $region8
    $region5: #{tpu_custom_call.1} parent=1 // loop_body
      %s15 = ssub.s32 %s10, 1
      %s16 = ssub.s32 %s10, 2
      %s17 = sadd.s32 %s10, 1
      %s18 = ssub.s32 %s10, %s17
      %p19 = scmp.eq.s32.totalorder %s18, 0
      %s21 = sadd.s32 %s20, 1
      %s22 = scalar_select %p19, %s20, %s21
      %p25 = pneg %p19
      %p26 = scmp.eq.s32.totalorder %s10, 4
      %p27 = por %p25, %p26
      %p28 = scmp.ne.s32.totalorder %s20, %s23
      %p29 = scmp.eq.s32.totalorder %s10, 0
      %p30 = por %p28, %p29
      %p31 = scmp.ne.s32.totalorder %s20, %s23
      %p32 = scmp.eq.s32.totalorder %s15, 4
      %p33 = por %p31, %p32
      %p34 = scmp.ne.s32.totalorder %s23, %s24
      %p35 = scmp.eq.s32.totalorder %s15, 0
      %p36 = por %p34, %p35
      %p37 = scmp.ne.s32.totalorder %s23, %s24
      %p38 = scmp.eq.s32.totalorder %s16, 4
      %p39 = por %p37, %p38
      %p41 = scmp.ne.s32.totalorder %s24, %s40
      %p42 = scmp.eq.s32.totalorder %s16, 0
      %p43 = por %p41, %p42
      %s44 = ssub.s32 %s10, %s17
      %p45 = scmp.eq.s32.totalorder %s44, 0
      %s47 = sadd.s32 %s46, 1
      %s48 = scalar_select %p45, %s46, %s47
      %p51 = pneg %p45
      %p52 = scmp.eq.s32.totalorder %s10, 4
      %p53 = por %p51, %p52
      %p54 = scmp.ne.s32.totalorder %s46, %s49
      %p55 = scmp.eq.s32.totalorder %s10, 0
      %p56 = por %p54, %p55
      %p57 = scmp.ne.s32.totalorder %s46, %s49
      %p58 = scmp.eq.s32.totalorder %s15, 4
      %p59 = por %p57, %p58
      %p60 = scmp.ne.s32.totalorder %s49, %s50
      %p61 = scmp.eq.s32.totalorder %s15, 0
      %p62 = por %p60, %p61
      %p63 = scmp.ne.s32.totalorder %s49, %s50
      %p64 = scmp.eq.s32.totalorder %s16, 4
      %p65 = por %p63, %p64
      %p67 = scmp.ne.s32.totalorder %s50, %s66
      %p68 = scmp.eq.s32.totalorder %s16, 0
      %p69 = por %p67, %p68
      %p70 = scmp.le.s32.totalorder 1, %s10
      %p71 = scmp.lt.s32.totalorder %s10, 6
      %p72 = pnand %p70, %p71
      %p73 = pneg %p72
      // Predicated region
      $region9: #{tpu_custom_call.1} parent=5 // pred_check
        _
      $region10: #{tpu_custom_call.1} parent=5 // pred_check_branch
        %75 = sbr.rel (%p72) target = $region12
      $region11: #{tpu_custom_call.1} parent=5 // pred_region
        %s76 = ssub.s32 %s10, 1
      $region12: #{tpu_custom_call.1} parent=5 // pred_fallthru
        _
      %p77 = scmp.lt.s32.totalorder %s10, 5
      // Predicated region
      $region13: #{tpu_custom_call.1} parent=5 // pred_check
        %p78 = pneg %p77
      $region14: #{tpu_custom_call.1} parent=5 // pred_check_branch
        %80 = sbr.rel (%p78) target = $region16
      $region15: #{tpu_custom_call.1} parent=5 // pred_region
        // Predicated region
        $region17: #{tpu_custom_call.1} parent=15 // pred_check
          %p81 = pneg %p30
        $region18: #{tpu_custom_call.1} parent=15 // pred_check_branch
          %83 = sbr.rel (%p81) target = $region20
        $region19: #{tpu_custom_call.1} parent=15 // pred_region
          %s84 = smul.u32 32, %s10
          %s85 = ssub.s32 130, %s84
          %p86 = scmp.lt.s32.totalorder %s85, 32
          %s87 = scalar_select %p86, %s85, 32
          %s88 = smul.u32 128, %s87
          %p89 = scmp.lt.s32.totalorder %s84, 129
          %s90 = scalar_select %p89, %s84, 129
          %s91 = smul.addr %s90, 8
          %s92 = scalar_lea.vmem %s0, %s91
          %s93 = smul.u32 32, %s10
          %s94 = ssub.s32 130, %s93
          %p95 = scmp.lt.s32.totalorder %s94, 32
          %s96 = scalar_select %p95, %s94, 32
          %s97 = smul.u32 128, %s96
        $region20: #{tpu_custom_call.1} parent=15 // pred_fallthru
          _
      $region16: #{tpu_custom_call.1} parent=5 // pred_fallthru
        _
      %p98 = scmp.le.s32.totalorder 1, %s10
      %p99 = scmp.lt.s32.totalorder %s10, 6
      %p100 = pnand %p98, %p99
      %p101 = pneg %p100
      // Predicated region
      $region21: #{tpu_custom_call.1} parent=5 // pred_check
        _
      $region22: #{tpu_custom_call.1} parent=5 // pred_check_branch
        %103 = sbr.rel (%p100) target = $region24
      $region23: #{tpu_custom_call.1} parent=5 // pred_region
        %s104 = ssub.s32 %s10, 1
        %s105 = smul.u32 32, %s15
        %s106 = ssub.s32 130, %s105
        %p107 = scmp.lt.s32.totalorder %s106, 32
        %s108 = scalar_select %p107, %s106, 32
        %s109 = smul.u32 128, %s108
        %p110 = scmp.lt.s32.totalorder %s105, 129
        %s111 = scalar_select %p110, %s105, 129
        %s112 = smul.addr %s111, 8
        %s113 = scalar_lea.vmem %s0, %s112
        %p114 = pneg %p36
        %p115 = pneg %p33
        %p116 = pneg %p62
        %p117 = pneg %p59
        %s118 = sand.u32 %s49, 1
        %s119 = scalar_lea.sflag [#allocation3], %s118
        %s120 = sand.u32 %s49, 1
        %s121 = smul.addr %s120, 512
        %s122 = scalar_lea.vmem [#allocation2], %s121
        %s123 = smul.u32 32, %s15
        %s124 = ssub.s32 130, %s123
        %p125 = scmp.lt.s32.totalorder %s124, 32
        %s126 = scalar_select %p125, %s124, 32
        %s127 = smul.u32 128, %s126
        %p128 = scmp.lt.s32.totalorder %s123, 129
        %s129 = scalar_select %p128, %s123, 129
        %s130 = smul.addr %s129, 8
        %s131 = scalar_lea.vmem %s0, %s130
        %s132 = smul.u32 32, %s15
        %s133 = ssub.s32 130, %s132
        %p134 = scmp.lt.s32.totalorder %s133, 32
        %s135 = scalar_select %p134, %s133, 32
        %s136 = smul.u32 128, %s135
        %s137 = smul.u32 32, %s15
        %s138 = ssub.s32 130, %s137
        %p139 = scmp.lt.s32.totalorder %s138, 32
        %s140 = scalar_select %p139, %s138, 32
        %s141 = smul.u32 128, %s140
        %s142 = smul.u32 %s141, 2
        %v143 = vld [vmem:[%s131] sm:$0xff]
        %v144 = vld [vmem:[%s131 + $0x8] sm:$0xff]
        %v145 = vld [vmem:[%s131 + $0x10] sm:$0xff]
        %v146 = vld [vmem:[%s131 + $0x18] sm:$0xff]
        %v147 = vld [vmem:[%s131 + $0x20] sm:$0xff]
        %v148 = vld [vmem:[%s131 + $0x28] sm:$0xff]
        %v149 = vld [vmem:[%s131 + $0x30] sm:$0xff]
        %v150 = vld [vmem:[%s131 + $0x38] sm:$0xff]
        %v151 = vld [vmem:[%s131 + $0x40] sm:$0xff]
        %v152 = vld [vmem:[%s131 + $0x48] sm:$0xff]
        %v153 = vld [vmem:[%s131 + $0x50] sm:$0xff]
        %v154 = vld [vmem:[%s131 + $0x58] sm:$0xff]
        %v155 = vld [vmem:[%s131 + $0x60] sm:$0xff]
        %v156 = vld [vmem:[%s131 + $0x68] sm:$0xff]
        %v157 = vld [vmem:[%s131 + $0x70] sm:$0xff]
        %v158 = vld [vmem:[%s131 + $0x78] sm:$0xff]
        %v159 = vld [vmem:[%s131 + $0x80] sm:$0xff]
        %v160 = vld [vmem:[%s131 + $0x88] sm:$0xff]
        %v161 = vld [vmem:[%s131 + $0x90] sm:$0xff]
        %v162 = vld [vmem:[%s131 + $0x98] sm:$0xff]
        %v163 = vld [vmem:[%s131 + $0xa0] sm:$0xff]
        %v164 = vld [vmem:[%s131 + $0xa8] sm:$0xff]
        %v165 = vld [vmem:[%s131 + $0xb0] sm:$0xff]
        %v166 = vld [vmem:[%s131 + $0xb8] sm:$0xff]
        %v167 = vld [vmem:[%s131 + $0xc0] sm:$0xff]
        %v168 = vld [vmem:[%s131 + $0xc8] sm:$0xff]
        %v169 = vld [vmem:[%s131 + $0xd0] sm:$0xff]
        %v170 = vld [vmem:[%s131 + $0xd8] sm:$0xff]
        %v171 = vld [vmem:[%s131 + $0xe0] sm:$0xff]
        %v172 = vld [vmem:[%s131 + $0xe8] sm:$0xff]
        %v173 = vld [vmem:[%s131 + $0xf0] sm:$0xff]
        %v174 = vld [vmem:[%s131 + $0xf8] sm:$0xff]
        %v175 = vlaneseq
        %v176 = vand.u32 %v175, 127
        %v177 = vadd.s32 %v176, 128
        %178 = vset.pattern.permute.xlu0 0
        %179 = vperm.xlu0 %178, %v143
        %v180 = vpop.permute.xlu0 %179
        %181 = vset.pattern.permute.xlu0 0
        %182 = vperm.xlu0 %181, %v144
        %v183 = vpop.permute.xlu0 %182
        %184 = vset.pattern.permute.xlu0 0
        %185 = vperm.xlu0 %184, %v145
        %v186 = vpop.permute.xlu0 %185
        %187 = vset.pattern.permute.xlu0 0
        %188 = vperm.xlu0 %187, %v146
        %v189 = vpop.permute.xlu0 %188
        %190 = vset.pattern.permute.xlu0 0
        %191 = vperm.xlu0 %190, %v147
        %v192 = vpop.permute.xlu0 %191
        %193 = vset.pattern.permute.xlu0 0
        %194 = vperm.xlu0 %193, %v148
        %v195 = vpop.permute.xlu0 %194
        %196 = vset.pattern.permute.xlu0 0
        %197 = vperm.xlu0 %196, %v149
        %v198 = vpop.permute.xlu0 %197
        %199 = vset.pattern.permute.xlu0 0
        %200 = vperm.xlu0 %199, %v150
        %v201 = vpop.permute.xlu0 %200
        %202 = vset.pattern.permute.xlu0 0
        %203 = vperm.xlu0 %202, %v151
        %v204 = vpop.permute.xlu0 %203
        %205 = vset.pattern.permute.xlu0 0
        %206 = vperm.xlu0 %205, %v152
        %v207 = vpop.permute.xlu0 %206
        %208 = vset.pattern.permute.xlu0 0
        %209 = vperm.xlu0 %208, %v153
        %v210 = vpop.permute.xlu0 %209
        %211 = vset.pattern.permute.xlu0 0
        %212 = vperm.xlu0 %211, %v154
        %v213 = vpop.permute.xlu0 %212
        %214 = vset.pattern.permute.xlu0 0
        %215 = vperm.xlu0 %214, %v155
        %v216 = vpop.permute.xlu0 %215
        %217 = vset.pattern.permute.xlu0 0
        %218 = vperm.xlu0 %217, %v156
        %v219 = vpop.permute.xlu0 %218
        %220 = vset.pattern.permute.xlu0 0
        %221 = vperm.xlu0 %220, %v157
        %v222 = vpop.permute.xlu0 %221
        %223 = vset.pattern.permute.xlu0 0
        %224 = vperm.xlu0 %223, %v158
        %v225 = vpop.permute.xlu0 %224
        %226 = vset.pattern.permute.xlu0 0
        %227 = vperm.xlu0 %226, %v159
        %v228 = vpop.permute.xlu0 %227
        %229 = vset.pattern.permute.xlu0 0
        %230 = vperm.xlu0 %229, %v160
        %v231 = vpop.permute.xlu0 %230
        %232 = vset.pattern.permute.xlu0 0
        %233 = vperm.xlu0 %232, %v161
        %v234 = vpop.permute.xlu0 %233
        %235 = vset.pattern.permute.xlu0 0
        %236 = vperm.xlu0 %235, %v162
        %v237 = vpop.permute.xlu0 %236
        %238 = vset.pattern.permute.xlu0 0
        %239 = vperm.xlu0 %238, %v163
        %v240 = vpop.permute.xlu0 %239
        %241 = vset.pattern.permute.xlu0 0
        %242 = vperm.xlu0 %241, %v164
        %v243 = vpop.permute.xlu0 %242
        %244 = vset.pattern.permute.xlu0 0
        %245 = vperm.xlu0 %244, %v165
        %v246 = vpop.permute.xlu0 %245
        %247 = vset.pattern.permute.xlu0 0
        %248 = vperm.xlu0 %247, %v166
        %v249 = vpop.permute.xlu0 %248
        %250 = vset.pattern.permute.xlu0 0
        %251 = vperm.xlu0 %250, %v167
        %v252 = vpop.permute.xlu0 %251
        %253 = vset.pattern.permute.xlu0 0
        %254 = vperm.xlu0 %253, %v168
        %v255 = vpop.permute.xlu0 %254
        %256 = vset.pattern.permute.xlu0 0
        %257 = vperm.xlu0 %256, %v169
        %v258 = vpop.permute.xlu0 %257
        %259 = vset.pattern.permute.xlu0 0
        %260 = vperm.xlu0 %259, %v170
        %v261 = vpop.permute.xlu0 %260
        %262 = vset.pattern.permute.xlu0 0
        %263 = vperm.xlu0 %262, %v171
        %v264 = vpop.permute.xlu0 %263
        %265 = vset.pattern.permute.xlu0 0
        %266 = vperm.xlu0 %265, %v172
        %v267 = vpop.permute.xlu0 %266
        %268 = vset.pattern.permute.xlu0 0
        %269 = vperm.xlu0 %268, %v173
        %v270 = vpop.permute.xlu0 %269
        %271 = vset.pattern.permute.xlu0 0
        %272 = vperm.xlu0 %271, %v174
        %v273 = vpop.permute.xlu0 %272
        %vm274 = vcmp.eq.s32.totalorder %v176, %v180
        %vm275 = vcmp.eq.s32.totalorder %v177, %v180
        %vm276 = vcmp.eq.s32.totalorder %v176, %v183
        %vm277 = vcmp.eq.s32.totalorder %v177, %v183
        %vm278 = vcmp.eq.s32.totalorder %v176, %v186
        %vm279 = vcmp.eq.s32.totalorder %v177, %v186
        %vm280 = vcmp.eq.s32.totalorder %v176, %v189
        %vm281 = vcmp.eq.s32.totalorder %v177, %v189
        %vm282 = vcmp.eq.s32.totalorder %v176, %v192
        %vm283 = vcmp.eq.s32.totalorder %v177, %v192
        %vm284 = vcmp.eq.s32.totalorder %v176, %v195
        %vm285 = vcmp.eq.s32.totalorder %v177, %v195
        %vm286 = vcmp.eq.s32.totalorder %v176, %v198
        %vm287 = vcmp.eq.s32.totalorder %v177, %v198
        %vm288 = vcmp.eq.s32.totalorder %v176, %v201
        %vm289 = vcmp.eq.s32.totalorder %v177, %v201
        %vm290 = vcmp.eq.s32.totalorder %v176, %v204
        %vm291 = vcmp.eq.s32.totalorder %v177, %v204
        %vm292 = vcmp.eq.s32.totalorder %v176, %v207
        %vm293 = vcmp.eq.s32.totalorder %v177, %v207
        %vm294 = vcmp.eq.s32.totalorder %v176, %v210
        %vm295 = vcmp.eq.s32.totalorder %v177, %v210
        %vm296 = vcmp.eq.s32.totalorder %v176, %v213
        %vm297 = vcmp.eq.s32.totalorder %v177, %v213
        %vm298 = vcmp.eq.s32.totalorder %v176, %v216
        %vm299 = vcmp.eq.s32.totalorder %v177, %v216
        %vm300 = vcmp.eq.s32.totalorder %v176, %v219
        %vm301 = vcmp.eq.s32.totalorder %v177, %v219
        %vm302 = vcmp.eq.s32.totalorder %v176, %v222
        %vm303 = vcmp.eq.s32.totalorder %v177, %v222
        %vm304 = vcmp.eq.s32.totalorder %v176, %v225
        %vm305 = vcmp.eq.s32.totalorder %v177, %v225
        %vm306 = vcmp.eq.s32.totalorder %v176, %v228
        %vm307 = vcmp.eq.s32.totalorder %v177, %v228
        %vm308 = vcmp.eq.s32.totalorder %v176, %v231
        %vm309 = vcmp.eq.s32.totalorder %v177, %v231
        %vm310 = vcmp.eq.s32.totalorder %v176, %v234
        %vm311 = vcmp.eq.s32.totalorder %v177, %v234
        %vm312 = vcmp.eq.s32.totalorder %v176, %v237
        %vm313 = vcmp.eq.s32.totalorder %v177, %v237
        %vm314 = vcmp.eq.s32.totalorder %v176, %v240
        %vm315 = vcmp.eq.s32.totalorder %v177, %v240
        %vm316 = vcmp.eq.s32.totalorder %v176, %v243
        %vm317 = vcmp.eq.s32.totalorder %v177, %v243
        %vm318 = vcmp.eq.s32.totalorder %v176, %v246
        %vm319 = vcmp.eq.s32.totalorder %v177, %v246
        %vm320 = vcmp.eq.s32.totalorder %v176, %v249
        %vm321 = vcmp.eq.s32.totalorder %v177, %v249
        %vm322 = vcmp.eq.s32.totalorder %v176, %v252
        %vm323 = vcmp.eq.s32.totalorder %v177, %v252
        %vm324 = vcmp.eq.s32.totalorder %v176, %v255
        %vm325 = vcmp.eq.s32.totalorder %v177, %v255
        %vm326 = vcmp.eq.s32.totalorder %v176, %v258
        %vm327 = vcmp.eq.s32.totalorder %v177, %v258
        %vm328 = vcmp.eq.s32.totalorder %v176, %v261
        %vm329 = vcmp.eq.s32.totalorder %v177, %v261
        %vm330 = vcmp.eq.s32.totalorder %v176, %v264
        %vm331 = vcmp.eq.s32.totalorder %v177, %v264
        %vm332 = vcmp.eq.s32.totalorder %v176, %v267
        %vm333 = vcmp.eq.s32.totalorder %v177, %v267
        %vm334 = vcmp.eq.s32.totalorder %v176, %v270
        %vm335 = vcmp.eq.s32.totalorder %v177, %v270
        %vm336 = vcmp.eq.s32.totalorder %v176, %v273
        %vm337 = vcmp.eq.s32.totalorder %v177, %v273
        %v338 = vsel %vm274, 1, 0
        %v339 = vsel %vm275, 1, 0
        %v340 = vsel %vm276, 1, 0
        %v341 = vsel %vm277, 1, 0
        %v342 = vsel %vm278, 1, 0
        %v343 = vsel %vm279, 1, 0
        %v344 = vsel %vm280, 1, 0
        %v345 = vsel %vm281, 1, 0
        %v346 = vsel %vm282, 1, 0
        %v347 = vsel %vm283, 1, 0
        %v348 = vsel %vm284, 1, 0
        %v349 = vsel %vm285, 1, 0
        %v350 = vsel %vm286, 1, 0
        %v351 = vsel %vm287, 1, 0
        %v352 = vsel %vm288, 1, 0
        %v353 = vsel %vm289, 1, 0
        %v354 = vsel %vm290, 1, 0
        %v355 = vsel %vm291, 1, 0
        %v356 = vsel %vm292, 1, 0
        %v357 = vsel %vm293, 1, 0
        %v358 = vsel %vm294, 1, 0
        %v359 = vsel %vm295, 1, 0
        %v360 = vsel %vm296, 1, 0
        %v361 = vsel %vm297, 1, 0
        %v362 = vsel %vm298, 1, 0
        %v363 = vsel %vm299, 1, 0
        %v364 = vsel %vm300, 1, 0
        %v365 = vsel %vm301, 1, 0
        %v366 = vsel %vm302, 1, 0
        %v367 = vsel %vm303, 1, 0
        %v368 = vsel %vm304, 1, 0
        %v369 = vsel %vm305, 1, 0
        %v370 = vsel %vm306, 1, 0
        %v371 = vsel %vm307, 1, 0
        %v372 = vsel %vm308, 1, 0
        %v373 = vsel %vm309, 1, 0
        %v374 = vsel %vm310, 1, 0
        %v375 = vsel %vm311, 1, 0
        %v376 = vsel %vm312, 1, 0
        %v377 = vsel %vm313, 1, 0
        %v378 = vsel %vm314, 1, 0
        %v379 = vsel %vm315, 1, 0
        %v380 = vsel %vm316, 1, 0
        %v381 = vsel %vm317, 1, 0
        %v382 = vsel %vm318, 1, 0
        %v383 = vsel %vm319, 1, 0
        %v384 = vsel %vm320, 1, 0
        %v385 = vsel %vm321, 1, 0
        %v386 = vsel %vm322, 1, 0
        %v387 = vsel %vm323, 1, 0
        %v388 = vsel %vm324, 1, 0
        %v389 = vsel %vm325, 1, 0
        %v390 = vsel %vm326, 1, 0
        %v391 = vsel %vm327, 1, 0
        %v392 = vsel %vm328, 1, 0
        %v393 = vsel %vm329, 1, 0
        %v394 = vsel %vm330, 1, 0
        %v395 = vsel %vm331, 1, 0
        %v396 = vsel %vm332, 1, 0
        %v397 = vsel %vm333, 1, 0
        %v398 = vsel %vm334, 1, 0
        %v399 = vsel %vm335, 1, 0
        %v400 = vsel %vm336, 1, 0
        %v401 = vsel %vm337, 1, 0
        %v402 = vcvt.s32.f32 %v338
        %v403 = vcvt.s32.f32 %v339
        %v404 = vcvt.s32.f32 %v340
        %v405 = vcvt.s32.f32 %v341
        %v406 = vcvt.s32.f32 %v342
        %v407 = vcvt.s32.f32 %v343
        %v408 = vcvt.s32.f32 %v344
        %v409 = vcvt.s32.f32 %v345
        %v410 = vcvt.s32.f32 %v346
        %v411 = vcvt.s32.f32 %v347
        %v412 = vcvt.s32.f32 %v348
        %v413 = vcvt.s32.f32 %v349
        %v414 = vcvt.s32.f32 %v350
        %v415 = vcvt.s32.f32 %v351
        %v416 = vcvt.s32.f32 %v352
        %v417 = vcvt.s32.f32 %v353
        %v418 = vcvt.s32.f32 %v354
        %v419 = vcvt.s32.f32 %v355
        %v420 = vcvt.s32.f32 %v356
        %v421 = vcvt.s32.f32 %v357
        %v422 = vcvt.s32.f32 %v358
        %v423 = vcvt.s32.f32 %v359
        %v424 = vcvt.s32.f32 %v360
        %v425 = vcvt.s32.f32 %v361
        %v426 = vcvt.s32.f32 %v362
        %v427 = vcvt.s32.f32 %v363
        %v428 = vcvt.s32.f32 %v364
        %v429 = vcvt.s32.f32 %v365
        %v430 = vcvt.s32.f32 %v366
        %v431 = vcvt.s32.f32 %v367
        %v432 = vcvt.s32.f32 %v368
        %v433 = vcvt.s32.f32 %v369
        %v434 = vcvt.s32.f32 %v370
        %v435 = vcvt.s32.f32 %v371
        %v436 = vcvt.s32.f32 %v372
        %v437 = vcvt.s32.f32 %v373
        %v438 = vcvt.s32.f32 %v374
        %v439 = vcvt.s32.f32 %v375
        %v440 = vcvt.s32.f32 %v376
        %v441 = vcvt.s32.f32 %v377
        %v442 = vcvt.s32.f32 %v378
        %v443 = vcvt.s32.f32 %v379
        %v444 = vcvt.s32.f32 %v380
        %v445 = vcvt.s32.f32 %v381
        %v446 = vcvt.s32.f32 %v382
        %v447 = vcvt.s32.f32 %v383
        %v448 = vcvt.s32.f32 %v384
        %v449 = vcvt.s32.f32 %v385
        %v450 = vcvt.s32.f32 %v386
        %v451 = vcvt.s32.f32 %v387
        %v452 = vcvt.s32.f32 %v388
        %v453 = vcvt.s32.f32 %v389
        %v454 = vcvt.s32.f32 %v390
        %v455 = vcvt.s32.f32 %v391
        %v456 = vcvt.s32.f32 %v392
        %v457 = vcvt.s32.f32 %v393
        %v458 = vcvt.s32.f32 %v394
        %v459 = vcvt.s32.f32 %v395
        %v460 = vcvt.s32.f32 %v396
        %v461 = vcvt.s32.f32 %v397
        %v462 = vcvt.s32.f32 %v398
        %v463 = vcvt.s32.f32 %v399
        %v464 = vcvt.s32.f32 %v400
        %v465 = vcvt.s32.f32 %v401
        %466 = vst [vmem:[%s122] sm:$0xff] %v402
        %467 = vst [vmem:[%s122 + $0x8] sm:$0xff] %v403
        %468 = vst [vmem:[%s122 + $0x10] sm:$0xff] %v404
        %469 = vst [vmem:[%s122 + $0x18] sm:$0xff] %v405
        %470 = vst [vmem:[%s122 + $0x20] sm:$0xff] %v406
        %471 = vst [vmem:[%s122 + $0x28] sm:$0xff] %v407
        %472 = vst [vmem:[%s122 + $0x30] sm:$0xff] %v408
        %473 = vst [vmem:[%s122 + $0x38] sm:$0xff] %v409
        %474 = vst [vmem:[%s122 + $0x40] sm:$0xff] %v410
        %475 = vst [vmem:[%s122 + $0x48] sm:$0xff] %v411
        %476 = vst [vmem:[%s122 + $0x50] sm:$0xff] %v412
        %477 = vst [vmem:[%s122 + $0x58] sm:$0xff] %v413
        %478 = vst [vmem:[%s122 + $0x60] sm:$0xff] %v414
        %479 = vst [vmem:[%s122 + $0x68] sm:$0xff] %v415
        %480 = vst [vmem:[%s122 + $0x70] sm:$0xff] %v416
        %481 = vst [vmem:[%s122 + $0x78] sm:$0xff] %v417
        %482 = vst [vmem:[%s122 + $0x80] sm:$0xff] %v418
        %483 = vst [vmem:[%s122 + $0x88] sm:$0xff] %v419
        %484 = vst [vmem:[%s122 + $0x90] sm:$0xff] %v420
        %485 = vst [vmem:[%s122 + $0x98] sm:$0xff] %v421
        %486 = vst [vmem:[%s122 + $0xa0] sm:$0xff] %v422
        %487 = vst [vmem:[%s122 + $0xa8] sm:$0xff] %v423
        %488 = vst [vmem:[%s122 + $0xb0] sm:$0xff] %v424
        %489 = vst [vmem:[%s122 + $0xb8] sm:$0xff] %v425
        %490 = vst [vmem:[%s122 + $0xc0] sm:$0xff] %v426
        %491 = vst [vmem:[%s122 + $0xc8] sm:$0xff] %v427
        %492 = vst [vmem:[%s122 + $0xd0] sm:$0xff] %v428
        %493 = vst [vmem:[%s122 + $0xd8] sm:$0xff] %v429
        %494 = vst [vmem:[%s122 + $0xe0] sm:$0xff] %v430
        %495 = vst [vmem:[%s122 + $0xe8] sm:$0xff] %v431
        %496 = vst [vmem:[%s122 + $0xf0] sm:$0xff] %v432
        %497 = vst [vmem:[%s122 + $0xf8] sm:$0xff] %v433
        %498 = vst [vmem:[%s122 + $0x100] sm:$0xff] %v434
        %499 = vst [vmem:[%s122 + $0x108] sm:$0xff] %v435
        %500 = vst [vmem:[%s122 + $0x110] sm:$0xff] %v436
        %501 = vst [vmem:[%s122 + $0x118] sm:$0xff] %v437
        %502 = vst [vmem:[%s122 + $0x120] sm:$0xff] %v438
        %503 = vst [vmem:[%s122 + $0x128] sm:$0xff] %v439
        %504 = vst [vmem:[%s122 + $0x130] sm:$0xff] %v440
        %505 = vst [vmem:[%s122 + $0x138] sm:$0xff] %v441
        %506 = vst [vmem:[%s122 + $0x140] sm:$0xff] %v442
        %507 = vst [vmem:[%s122 + $0x148] sm:$0xff] %v443
        %508 = vst [vmem:[%s122 + $0x150] sm:$0xff] %v444
        %509 = vst [vmem:[%s122 + $0x158] sm:$0xff] %v445
        %510 = vst [vmem:[%s122 + $0x160] sm:$0xff] %v446
        %511 = vst [vmem:[%s122 + $0x168] sm:$0xff] %v447
        %512 = vst [vmem:[%s122 + $0x170] sm:$0xff] %v448
        %513 = vst [vmem:[%s122 + $0x178] sm:$0xff] %v449
        %514 = vst [vmem:[%s122 + $0x180] sm:$0xff] %v450
        %515 = vst [vmem:[%s122 + $0x188] sm:$0xff] %v451
        %516 = vst [vmem:[%s122 + $0x190] sm:$0xff] %v452
        %517 = vst [vmem:[%s122 + $0x198] sm:$0xff] %v453
        %518 = vst [vmem:[%s122 + $0x1a0] sm:$0xff] %v454
        %519 = vst [vmem:[%s122 + $0x1a8] sm:$0xff] %v455
        %520 = vst [vmem:[%s122 + $0x1b0] sm:$0xff] %v456
        %521 = vst [vmem:[%s122 + $0x1b8] sm:$0xff] %v457
        %522 = vst [vmem:[%s122 + $0x1c0] sm:$0xff] %v458
        %523 = vst [vmem:[%s122 + $0x1c8] sm:$0xff] %v459
        %524 = vst [vmem:[%s122 + $0x1d0] sm:$0xff] %v460
        %525 = vst [vmem:[%s122 + $0x1d8] sm:$0xff] %v461
        %526 = vst [vmem:[%s122 + $0x1e0] sm:$0xff] %v462
        %527 = vst [vmem:[%s122 + $0x1e8] sm:$0xff] %v463
        %528 = vst [vmem:[%s122 + $0x1f0] sm:$0xff] %v464
        %529 = vst [vmem:[%s122 + $0x1f8] sm:$0xff] %v465
        %s530 = sand.u32 %s49, 1
        %s531 = scalar_lea.sflag [#allocation3], %s530
        %s532 = sand.u32 %s49, 1
        %s533 = smul.addr %s532, 512
        %s534 = scalar_lea.vmem [#allocation2], %s533
        // Predicated region
        $region25: #{tpu_custom_call.1} parent=23 // pred_check
          %p535 = pneg %p59
        $region26: #{tpu_custom_call.1} parent=23 // pred_check_branch
          %537 = sbr.rel (%p535) target = $region28
        $region27: #{tpu_custom_call.1} parent=23 // pred_region
          %s538 = smul.u32 32, %s15
          %s539 = ssub.s32 130, %s538
          %p540 = scmp.lt.s32.totalorder %s539, 32
          %s541 = scalar_select %p540, %s539, 32
          %s542 = smul.u32 128, %s541
          %s543 = smul.u32 %s542, 2
          %s545 = ssub.s32 8192, %s543
          %546 = vsyncadd %s531, %s545
          %p547 = scmp.ne.s32.totalorder 0, %s543
          %s548 = smul.addr %s538, 2
          %s549 = smul.addr %s548, 128
          %s550 = scalar_lea.hbm %s1, %s549
          %s551 = smul.u32 16, %s541
          %s552 = sshll.u32 %s534, 4
          %s553 = int_to_ptr.vmem [resolvable:$true] %s552
          %s554 = sshll.u32 %s551, 4
          %558 = dma.vmem_to_hbm [thread:$0]  (%p547), %s553, %s554, %s550, %s531, 256, 256, 16
        $region28: #{tpu_custom_call.1} parent=23 // pred_fallthru
          _
      $region24: #{tpu_custom_call.1} parent=5 // pred_fallthru
        _
      %p559 = scmp.le.s32.totalorder 2, %s10
      // Predicated region
      $region29: #{tpu_custom_call.1} parent=5 // pred_check
        %p560 = pneg %p559
      $region30: #{tpu_custom_call.1} parent=5 // pred_check_branch
        %562 = sbr.rel (%p560) target = $region32
      $region31: #{tpu_custom_call.1} parent=5 // pred_region
        %s563 = ssub.s32 %s10, 2
        // Predicated region
        $region33: #{tpu_custom_call.1} parent=31 // pred_check
          %p564 = pneg %p65
        $region34: #{tpu_custom_call.1} parent=31 // pred_check_branch
          %566 = sbr.rel (%p564) target = $region36
        $region35: #{tpu_custom_call.1} parent=31 // pred_region
          %s567 = sand.u32 %s50, 1
          %s568 = scalar_lea.sflag [#allocation3], %s567
          %s569 = sand.u32 %s50, 1
          %s570 = smul.addr %s569, 512
          %s571 = scalar_lea.vmem [#allocation2], %s570
          %572 = dma.done %s568, 8192
        $region36: #{tpu_custom_call.1} parent=31 // pred_fallthru
          _
      $region32: #{tpu_custom_call.1} parent=5 // pred_fallthru
        _
    $region6: #{tpu_custom_call.1} parent=1 // loop_footer
      %s14 = sadd.s32 1, %s10
    $region7: #{tpu_custom_call.1} parent=1 // loop_footer_branch
      %9 = sbr.rel target = $region3
    $region8: #{tpu_custom_call.1} parent=1 // loop_exit
      _
    %573 = vsyncpa [#allocation3], 1
    %s574 = scalar_lea.sflag [#allocation3], 1
    %575 = vsyncpa %s574, 1

</llo_original>
